<compile_context>
chip_gen: v5e
topology: v5e:2x2
jax: 0.10.0
libtpu: 0.0.40
codegen_flags: <defaults>
</compile_context>

<pallas_src>
import jax
import jax.numpy as jnp
from jax.experimental import pallas as pl
from jax.experimental.pallas import tpu as pltpu


def ta_layer_kernel(x_ref, w1_ref, b1_ref, w2_ref, b2_ref, o_ref):
    # One (TILE_P, 128) lane-dense row tile per grid step; both matmuls + ReLU fused.
    x = x_ref[...]                                                  # (TILE_P, 128)
    h = jnp.dot(x, w1_ref[...], preferred_element_type=jnp.float32)  # (TILE_P, H*pack)
    h = jnp.maximum(h + b1_ref[...], 0.0)                            # f32 epilogue
    o = jnp.dot(h.astype(w2_ref.dtype), w2_ref[...],
                preferred_element_type=jnp.float32)                  # (TILE_P, 128)
    o_ref[...] = (o + b2_ref[...]).astype(o_ref.dtype)


def ta_layer(x, w1, b1, w2, b2, *, tile_rows_packed=512):
    """x: (..., dim_ta). w1: (dim_ta, hidden), w2: (hidden, dim_ta).

    Weights are (in_features, out_features), i.e. transpose of nn.Linear.weight.
    """
    orig_shape = x.shape
    dim_ta = orig_shape[-1]
    hidden = w1.shape[1]

    x2d = x.reshape(-1, dim_ta)
    n = x2d.shape[0]

    # ---- Lane-dense packing factor ----------------------------------------
    pack = 128 // dim_ta if (dim_ta <= 128 and 128 % dim_ta == 0) else 1
    packed_dim = dim_ta * pack        # 128 for dim_ta = 32
    packed_hidden = hidden * pack     # 32  for hidden = 8

    # Block-diagonal weights (exact: off-diagonal zeros contribute 0.0 exactly).
    eye = jnp.eye(pack, dtype=w1.dtype)
    w1p = jnp.kron(eye, w1).astype(x.dtype)           # (packed_dim, packed_hidden)
    w2p = jnp.kron(eye, w2).astype(x.dtype)           # (packed_hidden, packed_dim)
    b1p = jnp.tile(b1, pack).reshape(1, packed_hidden).astype(jnp.float32)
    b2p = jnp.tile(b2, pack).reshape(1, packed_dim).astype(jnp.float32)

    # ---- Pad rows to a whole number of packed tiles ------------------------
    n_packed = pl.cdiv(n, pack)
    tile_p = min(tile_rows_packed, pl.cdiv(n_packed, 8) * 8)   # multiple of 8 sublanes
    padded_packed = pl.cdiv(n_packed, tile_p) * tile_p
    n_padded = padded_packed * pack
    if n_padded != n:
        x2d = jnp.pad(x2d, ((0, n_padded - n), (0, 0)))
    x_packed = x2d.reshape(padded_packed, packed_dim)

    grid = (padded_packed // tile_p,)
    dsize = jnp.dtype(x.dtype).itemsize
    cost = pl.CostEstimate(
        flops=4 * padded_packed * packed_dim * packed_hidden,
        transcendentals=0,
        bytes_accessed=2 * padded_packed * packed_dim * dsize
        + (w1p.size + w2p.size) * dsize + (b1p.size + b2p.size) * 4,
    )

    out_packed = pl.pallas_call(
        ta_layer_kernel,
        out_shape=jax.ShapeDtypeStruct((padded_packed, packed_dim), x.dtype),
        grid_spec=pltpu.PrefetchScalarGridSpec(
            num_scalar_prefetch=0,
            grid=grid,
            in_specs=[
                pl.BlockSpec((tile_p, packed_dim), lambda i: (i, 0)),        # x tile
                pl.BlockSpec((packed_dim, packed_hidden), lambda i: (0, 0)),  # W1'
                pl.BlockSpec((1, packed_hidden), lambda i: (0, 0)),           # b1'
                pl.BlockSpec((packed_hidden, packed_dim), lambda i: (0, 0)),  # W2'
                pl.BlockSpec((1, packed_dim), lambda i: (0, 0)),              # b2'
            ],
            out_specs=pl.BlockSpec((tile_p, packed_dim), lambda i: (i, 0)),
        ),
        compiler_params=pltpu.CompilerParams(
            dimension_semantics=("parallel",),
            vmem_limit_bytes=64 * 1024 * 1024,
        ),
        cost_estimate=cost,
    )(x_packed, w1p, b1p, w2p, b2p)

    out2d = out_packed.reshape(n_padded, dim_ta)[:n]
    return out2d.reshape(orig_shape)


def reference(x, w1, b1, w2, b2):
    h = jnp.maximum(x @ w1 + b1, 0.0)
    return h @ w2 + b2


if __name__ == "__main__":
    dim_ta = 32
    reduction_ta = 4
    hidden = dim_ta // reduction_ta

    key = jax.random.PRNGKey(0)
    kx, kw1, kb1, kw2, kb2, kx2 = jax.random.split(key, 6)

    # Deterministic synthetic parameters (PyTorch-Linear-like uniform init).
    lim1 = 1.0 / jnp.sqrt(dim_ta)
    lim2 = 1.0 / jnp.sqrt(hidden)
    w1 = jax.random.uniform(kw1, (dim_ta, hidden), jnp.float32, -lim1, lim1)
    b1 = jax.random.uniform(kb1, (hidden,), jnp.float32, -lim1, lim1)
    w2 = jax.random.uniform(kw2, (hidden, dim_ta), jnp.float32, -lim2, lim2)
    b2 = jax.random.uniform(kb2, (dim_ta,), jnp.float32, -lim2, lim2)

    # Small, module-consistent input: (batch=2, seq=8, dim_ta=32)
    x = jax.random.normal(kx, (2, 8, dim_ta), dtype=jnp.float32)
    out = ta_layer(x, w1, b1, w2, b2)
    jax.block_until_ready(out)
    ref = reference(x, w1, b1, w2, b2)
    assert out.shape == x.shape
    assert jnp.allclose(out, ref, atol=1e-5, rtol=1e-5)

    # Second check: row count not a multiple of the pack/tile (exercises padding path).
    x_odd = jax.random.normal(kx2, (3, 50, dim_ta), dtype=jnp.float32)
    out_odd = ta_layer(x_odd, w1, b1, w2, b2)
    jax.block_until_ready(out_odd)
    ref_odd = reference(x_odd, w1, b1, w2, b2)
    assert out_odd.shape == x_odd.shape
    assert jnp.allclose(out_odd, ref_odd, atol=1e-5, rtol=1e-5)

    print("KERNEL_OK")
</pallas_src>

<mosaic_0001>
module attributes {stable_mosaic.version = 11 : i64} {
  func.func @ta_layer_kernel(%arg0: i32, %arg1: memref<8x128xf32, #tpu.memory_space<vmem>>, %arg2: memref<128x32xf32, #tpu.memory_space<vmem>>, %arg3: memref<1x32xf32, #tpu.memory_space<vmem>>, %arg4: memref<32x128xf32, #tpu.memory_space<vmem>>, %arg5: memref<1x128xf32, #tpu.memory_space<vmem>>, %arg6: memref<8x128xf32, #tpu.memory_space<vmem>>) attributes {dimension_semantics = [#tpu.dimension_semantics<parallel>], iteration_bounds = array<i64: 1>, scalar_prefetch = 0 : i64, scratch_operands = 0 : i64, tpu.core_type = #tpu.core_type<tc>, window_params = [{transform_indices = @transform_0, window_bounds = array<i64: 8, 128>}, {pipeline_mode = #tpu.pipeline_mode<synchronous>, transform_indices = @transform_1, window_bounds = array<i64: 128, 32>}, {pipeline_mode = #tpu.pipeline_mode<synchronous>, transform_indices = @transform_2, window_bounds = array<i64: 1, 32>}, {pipeline_mode = #tpu.pipeline_mode<synchronous>, transform_indices = @transform_3, window_bounds = array<i64: 32, 128>}, {pipeline_mode = #tpu.pipeline_mode<synchronous>, transform_indices = @transform_4, window_bounds = array<i64: 1, 128>}, {transform_indices = @transform_5, window_bounds = array<i64: 8, 128>}]} {
    %c0 = arith.constant 0 : index
    %c0_0 = arith.constant 0 : index
    %0 = vector.load %arg1[%c0, %c0_0] : memref<8x128xf32, #tpu.memory_space<vmem>>, vector<8x128xf32>
    %c0_1 = arith.constant 0 : index
    %c0_2 = arith.constant 0 : index
    %1 = vector.load %arg2[%c0_1, %c0_2] : memref<128x32xf32, #tpu.memory_space<vmem>>, vector<128x32xf32>
    %cst = arith.constant dense<0.000000e+00> : vector<8x32xf32>
    %2 = tpu.matmul %0, %1, %cst {dimension_numbers = #tpu.dot_dimension_numbers<[1], [0], [0], [1], [0, 0, 1, 1], [], []>} : vector<8x128xf32>, vector<128x32xf32>, vector<8x32xf32> -> vector<8x32xf32>
    %c0_3 = arith.constant 0 : index
    %c0_4 = arith.constant 0 : index
    %3 = vector.load %arg3[%c0_3, %c0_4] : memref<1x32xf32, #tpu.memory_space<vmem>>, vector<1x32xf32>
    %4 = vector.broadcast %3 : vector<1x32xf32> to vector<8x32xf32>
    %5 = arith.addf %2, %4 : vector<8x32xf32>
    %cst_5 = arith.constant 0.000000e+00 : f32
    %6 = vector.broadcast %cst_5 : f32 to vector<8x32xf32>
    %7 = arith.maximumf %5, %6 : vector<8x32xf32>
    %c0_6 = arith.constant 0 : index
    %c0_7 = arith.constant 0 : index
    %8 = vector.load %arg4[%c0_6, %c0_7] : memref<32x128xf32, #tpu.memory_space<vmem>>, vector<32x128xf32>
    %cst_8 = arith.constant dense<0.000000e+00> : vector<8x128xf32>
    %9 = tpu.matmul %7, %8, %cst_8 {dimension_numbers = #tpu.dot_dimension_numbers<[1], [0], [0], [1], [0, 0, 1, 1], [], []>} : vector<8x32xf32>, vector<32x128xf32>, vector<8x128xf32> -> vector<8x128xf32>
    %c0_9 = arith.constant 0 : index
    %c0_10 = arith.constant 0 : index
    %10 = vector.load %arg5[%c0_9, %c0_10] : memref<1x128xf32, #tpu.memory_space<vmem>>, vector<1x128xf32>
    %11 = vector.broadcast %10 : vector<1x128xf32> to vector<8x128xf32>
    %12 = arith.addf %9, %11 : vector<8x128xf32>
    %c0_11 = arith.constant 0 : index
    %c0_12 = arith.constant 0 : index
    %13 = vector.load %arg6[%c0_11, %c0_12] : memref<8x128xf32, #tpu.memory_space<vmem>>, vector<8x128xf32>
    tpu.vector_store %arg6[%c0_11, %c0_12], %12 {strides = array<i32>} : memref<8x128xf32, #tpu.memory_space<vmem>>, vector<8x128xf32>,
    return
  }
  func.func @transform_0(%arg0: i32) -> (i32, i32) {
    %c0_i32 = arith.constant 0 : i32
    %c0_i32_0 = arith.constant 0 : i32
    return %arg0, %c0_i32 : i32, i32
  }
  func.func @transform_1(%arg0: i32) -> (i32, i32) {
    %c0_i32 = arith.constant 0 : i32
    %c0_i32_0 = arith.constant 0 : i32
    %c0_i32_1 = arith.constant 0 : i32
    return %c0_i32, %c0_i32_0 : i32, i32
  }
  func.func @transform_2(%arg0: i32) -> (i32, i32) {
    %c0_i32 = arith.constant 0 : i32
    %c0_i32_0 = arith.constant 0 : i32
    %c0_i32_1 = arith.constant 0 : i32
    return %c0_i32, %c0_i32_0 : i32, i32
  }
  func.func @transform_3(%arg0: i32) -> (i32, i32) {
    %c0_i32 = arith.constant 0 : i32
    %c0_i32_0 = arith.constant 0 : i32
    %c0_i32_1 = arith.constant 0 : i32
    return %c0_i32, %c0_i32_0 : i32, i32
  }
  func.func @transform_4(%arg0: i32) -> (i32, i32) {
    %c0_i32 = arith.constant 0 : i32
    %c0_i32_0 = arith.constant 0 : i32
    %c0_i32_1 = arith.constant 0 : i32
    return %c0_i32, %c0_i32_0 : i32, i32
  }
  func.func @transform_5(%arg0: i32) -> (i32, i32) {
    %c0_i32 = arith.constant 0 : i32
    %c0_i32_0 = arith.constant 0 : i32
    return %arg0, %c0_i32 : i32, i32
  }
}

</mosaic_0001>

<llo_original>
// kernel: tpu_custom_call.1
$region0: #{tpu_custom_call.1}
  #allocation0 [shape = 'u32[]', space=smem, size = 0x4, offset = 0x4, fixed_abs, tag = 'smem constant byte address 0x4 - core index']
  #allocation1 [shape = 'u32[72,128]{1,0:T(1,128)}', space=vmem, size = 0x9000, scoped, tag = 'internal scratch']
  %s0 = inlined_call_operand.vmem [shape: f32[8,128], index: 0, kind: input, shape index: {}]
  %s1 = inlined_call_operand.vmem [shape: f32[128,32], index: 1, kind: input, shape index: {}]
  %s2 = inlined_call_operand.vmem [shape: f32[1,32], index: 2, kind: input, shape index: {}]
  %s3 = inlined_call_operand.vmem [shape: f32[32,128], index: 3, kind: input, shape index: {}]
  %s4 = inlined_call_operand.vmem [shape: f32[1,128], index: 4, kind: input, shape index: {}]
  %s5 = inlined_call_operand.hbm [shape: f32[8,128], index: 5, kind: output, shape index: {}]
  %s6 = sld [smem:[#allocation0]]
  $region30: #{tpu_custom_call.1} parent=0
    _
  %s8 = ssub.s32 1, %s6
  %s9 = scalar_select 0, %s8, %s6
  $region1: #{tpu_custom_call.1} parent=0
    #allocation2 [shape = 'u8[4096]{0}', space=vmem, size = 0x1000, scoped, tag = 'output window, operand 0, single buffered']
    #allocation3 [shape = 's32[1]{0}', space=sflag, size = 0x4, scoped, tag = 'scoped memory for tpu_custom_call.1']
    %10 = vsyncpa [#allocation3], 0
    // Predicated region
    $region2: #{tpu_custom_call.1} parent=1 // pred_check
      _
    $region3: #{tpu_custom_call.1} parent=1 // pred_check_branch
      %12 = sbr.rel (0) target = $region5
    $region4: #{tpu_custom_call.1} parent=1 // pred_region
      _
    $region5: #{tpu_custom_call.1} parent=1 // pred_fallthru
      _
    // Predicated region
    $region6: #{tpu_custom_call.1} parent=1 // pred_check
      _
    $region7: #{tpu_custom_call.1} parent=1 // pred_check_branch
      %14 = sbr.rel (0) target = $region9
    $region8: #{tpu_custom_call.1} parent=1 // pred_region
      _
    $region9: #{tpu_custom_call.1} parent=1 // pred_fallthru
      _
    // Predicated region
    $region10: #{tpu_custom_call.1} parent=1 // pred_check
      _
    $region11: #{tpu_custom_call.1} parent=1 // pred_check_branch
      %16 = sbr.rel (0) target = $region13
    $region12: #{tpu_custom_call.1} parent=1 // pred_region
      _
    $region13: #{tpu_custom_call.1} parent=1 // pred_fallthru
      _
    // Predicated region
    $region14: #{tpu_custom_call.1} parent=1 // pred_check
      _
    $region15: #{tpu_custom_call.1} parent=1 // pred_check_branch
      %18 = sbr.rel (0) target = $region17
    $region16: #{tpu_custom_call.1} parent=1 // pred_region
      _
    $region17: #{tpu_custom_call.1} parent=1 // pred_fallthru
      _
    // Predicated region
    $region18: #{tpu_custom_call.1} parent=1 // pred_check
      _
    $region19: #{tpu_custom_call.1} parent=1 // pred_check_branch
      %20 = sbr.rel (0) target = $region21
    $region20: #{tpu_custom_call.1} parent=1 // pred_region
      _
    $region21: #{tpu_custom_call.1} parent=1 // pred_fallthru
      _
    %v21 = vld [vmem:[%s0] sm:$0xff]
    %v22 = vld [vmem:[%s1] sm:$0xff]
    %v23 = vld [vmem:[%s1 + $0x8] sm:$0xff]
    %v24 = vld [vmem:[%s1 + $0x10] sm:$0xff]
    %v25 = vld [vmem:[%s1 + $0x18] sm:$0xff]
    %v26 = vld [vmem:[%s1 + $0x20] sm:$0xff]
    %v27 = vld [vmem:[%s1 + $0x28] sm:$0xff]
    %v28 = vld [vmem:[%s1 + $0x30] sm:$0xff]
    %v29 = vld [vmem:[%s1 + $0x38] sm:$0xff]
    %v30 = vld [vmem:[%s1 + $0x40] sm:$0xff]
    %v31 = vld [vmem:[%s1 + $0x48] sm:$0xff]
    %v32 = vld [vmem:[%s1 + $0x50] sm:$0xff]
    %v33 = vld [vmem:[%s1 + $0x58] sm:$0xff]
    %v34 = vld [vmem:[%s1 + $0x60] sm:$0xff]
    %v35 = vld [vmem:[%s1 + $0x68] sm:$0xff]
    %v36 = vld [vmem:[%s1 + $0x70] sm:$0xff]
    %v37 = vld [vmem:[%s1 + $0x78] sm:$0xff]
    %v38 = vld [vmem:[%s2] sm:$0x1]
    %v40 = vperm.slane %v38, 0
    %42 = vmatpush.msra.mxu0 %v37
    %43 = vmatpush.msra.mxu0 %v36
    %44 = vmatpush.msra.mxu0 %v35
    %45 = vmatpush.msra.mxu0 %v34
    %46 = vmatpush.msra.mxu0 %v33
    %47 = vmatpush.msra.mxu0 %v32
    %48 = vmatpush.msra.mxu0 %v31
    %49 = vmatpush.msra.mxu0 %v30
    %50 = vmatpush.msra.mxu0 %v29
    %51 = vmatpush.msra.mxu0 %v28
    %52 = vmatpush.msra.mxu0 %v27
    %53 = vmatpush.msra.mxu0 %v26
    %54 = vmatpush.msra.mxu0 %v25
    %55 = vmatpush.msra.mxu0 %v24
    %56 = vmatpush.msra.mxu0 %v23
    %57 = vmatpush.msra.mxu0 %v22
    %58 = vmatmul.f32.gmra.mxu0 %v21
    %v59 = vpop.f32.mrf.mxu0
    %v60 = vadd.f32 %v40, %v59
    %61 = vdwg.mxu0
    %v62 = vmax.f32 %v60, 0.0
    %v63 = vld [vmem:[%s3] sm:$0xff]
    %v64 = vld [vmem:[%s3 + $0x8] sm:$0xff]
    %v65 = vld [vmem:[%s3 + $0x10] sm:$0xff]
    %v66 = vld [vmem:[%s3 + $0x18] sm:$0xff]
    %v67 = vld [vmem:[%s4] sm:$0x1]
    %v69 = vperm.slane %v67, 0
    %vm71 = vcmask 261120
    %v73 = vsel %vm71, %v62, 0
    %75 = vmatpush.msra.mxu0 0.0
    %76 = vmatpush.msra.mxu0 0.0
    %77 = vmatpush.msra.mxu0 0.0
    %78 = vmatpush.msra.mxu0 0.0
    %79 = vmatpush.msra.mxu0 0.0
    %80 = vmatpush.msra.mxu0 0.0
    %81 = vmatpush.msra.mxu0 0.0
    %82 = vmatpush.msra.mxu0 0.0
    %83 = vmatpush.msra.mxu0 0.0
    %84 = vmatpush.msra.mxu0 0.0
    %85 = vmatpush.msra.mxu0 0.0
    %86 = vmatpush.msra.mxu0 0.0
    %87 = vmatpush.msra.mxu0 %v66
    %88 = vmatpush.msra.mxu0 %v65
    %89 = vmatpush.msra.mxu0 %v64
    %90 = vmatpush.msra.mxu0 %v63
    %91 = vmatmul.f32.gmra.mxu0 %v73
    %v92 = vpop.f32.mrf.mxu0
    %v93 = vadd.f32 %v69, %v92
    %94 = vdwg.mxu0
    %95 = vst [vmem:[#allocation2] sm:$0xff] %v93
    // Predicated region
    $region22: #{tpu_custom_call.1} parent=1 // pred_check
      _
    $region23: #{tpu_custom_call.1} parent=1 // pred_check_branch
      %97 = sbr.rel (0) target = $region25
    $region24: #{tpu_custom_call.1} parent=1 // pred_region
      %99 = vsyncadd [#allocation3], 0
      %s101 = sshll.u32 [#allocation2], 4
      %s102 = int_to_ptr.vmem [resolvable:$true] %s101
      %s103 = sshll.u32 %s5, 4
      %s104 = int_to_ptr.hbm [resolvable:$true] %s103
      %106 = dma.vmem_to_hbm [thread:$0]  %s102, 128, %s104, [#allocation3]
    $region25: #{tpu_custom_call.1} parent=1 // pred_fallthru
      _
    // Predicated region
    $region26: #{tpu_custom_call.1} parent=1 // pred_check
      _
    $region27: #{tpu_custom_call.1} parent=1 // pred_check_branch
      %108 = sbr.rel (0) target = $region29
    $region28: #{tpu_custom_call.1} parent=1 // pred_region
      %110 = dma.done [#allocation3], 128
    $region29: #{tpu_custom_call.1} parent=1 // pred_fallthru
      _
    %111 = vsyncpa [#allocation3], 1

</llo_original>
